<compile_context>
chip_gen: v7x
topology: tpu7x:2x2x1
jax: 0.10.0
libtpu: 0.0.40
codegen_flags: <defaults>
</compile_context>

<pallas_src>
import jax
import jax.numpy as jnp
from jax.experimental import pallas as pl
from jax.experimental.pallas import tpu as pltpu


def _round_up(n, m):
    return ((n + m - 1) // m) * m


def _make_kernel(num_heads):
    """Kernel over one batch tile: for every head, out_h = x @ W_h.T + b_h."""

    def kernel(*refs):
        x_ref = refs[0]
        w_refs = refs[1:1 + num_heads]                      # (D, P_h) bf16, resident
        b_refs = refs[1 + num_heads:1 + 2 * num_heads]      # (1, P_h) f32, resident
        out_refs = refs[1 + 2 * num_heads:]                 # (tile_b, P_h) f32
        x_bf = x_ref[...].astype(jnp.bfloat16)              # fused f32->bf16 cast
        for w_ref, b_ref, o_ref in zip(w_refs, b_refs, out_refs):
            acc = jnp.dot(x_bf, w_ref[...], preferred_element_type=jnp.float32)
            o_ref[...] = (acc + b_ref[...]).astype(o_ref.dtype)

    return kernel


def _swav_forward(x, wts, biases, *, tile_b=512):
    """Fused multi-head linear: x (B, D) f32; wts[h] (D, P_h) bf16; biases[h] (1, P_h) f32.

    Returns a list of (B, P_h) float32 logits, one per head, from a single
    pallas_call (1-D batch grid, weights VMEM-resident).
    """
    B, D = x.shape
    num_heads = len(wts)
    p_list = [int(w.shape[1]) for w in wts]

    # --- tile_b selection -------------------------------------------------
    tile_b = min(tile_b, _round_up(B, 16))
    tile_b = max(16, _round_up(tile_b, 16))

    x_row_bytes = D * 4
    w_bytes = sum(D * p * 2 + p * 4 for p in p_list)        # resident weights + bias
    out_row_bytes = sum(p * 4 for p in p_list)

    def footprint(tb):
        # x (double-buffered) + weights/bias (conservatively x2) + outputs (x2)
        return 2 * tb * x_row_bytes + 2 * w_bytes + 2 * tb * out_row_bytes

    # Keep the footprint well under v7x's 64 MiB VMEM.
    budget = 40 * 1024 * 1024
    while tile_b > 16 and footprint(tile_b) > budget:
        tile_b = max(16, _round_up(tile_b // 2, 16))
    # Keep >= 2 batch blocks when possible so v7x's 2nd TensorCore has work.
    while tile_b > 16 and pl.cdiv(B, tile_b) < 2:
        tile_b = max(16, _round_up(tile_b // 2, 16))

    grid = (pl.cdiv(B, tile_b),)

    in_specs = [pl.BlockSpec((tile_b, D), lambda i: (i, 0))]          # x batch tile
    in_specs += [pl.BlockSpec((D, p), lambda i: (0, 0)) for p in p_list]   # W.T resident
    in_specs += [pl.BlockSpec((1, p), lambda i: (0, 0)) for p in p_list]   # bias resident
    out_specs = [pl.BlockSpec((tile_b, p), lambda i: (i, 0)) for p in p_list]
    out_shape = [jax.ShapeDtypeStruct((B, p), jnp.float32) for p in p_list]

    cost = pl.CostEstimate(
        flops=sum(2 * B * D * p for p in p_list),
        transcendentals=0,
        bytes_accessed=(B * D * 4                       # x (f32, read once)
                        + w_bytes                       # W.T + bias (read once, resident)
                        + B * out_row_bytes),           # outputs (f32)
    )

    vmem_limit = min(max(footprint(tile_b) + (8 << 20), 32 << 20), 56 << 20)

    outs = pl.pallas_call(
        _make_kernel(num_heads),
        out_shape=out_shape,
        grid_spec=pltpu.PrefetchScalarGridSpec(
            num_scalar_prefetch=0,
            grid=grid,
            in_specs=in_specs,
            out_specs=out_specs,
        ),
        compiler_params=pltpu.CompilerParams(
            dimension_semantics=("parallel",),
            vmem_limit_bytes=vmem_limit),
        cost_estimate=cost,
    )(x, *wts, *biases)

    return list(outs)


class SwaVPrototypesJAX:
    """JAX/Pallas port of SwaVPrototypes (forward pass only)."""

    def __init__(self, input_dim=128, n_prototypes=3000,
                 n_steps_frozen_prototypes=0, key=None):
        self.n_prototypes = (n_prototypes if isinstance(n_prototypes, list)
                             else [n_prototypes])
        self._is_single_prototype = isinstance(n_prototypes, int)
        self.n_steps_frozen_prototypes = n_steps_frozen_prototypes
        self.input_dim = input_dim
        # TODO(synk): gradient freezing (_freeze_prototypes_if_required) is a
        # training-time autograd concern with no forward-pass Pallas analogue.

        if key is None:
            key = jax.random.PRNGKey(0)
        self.heads = []  # list of (weight (P, D) f32, bias (P,) f32)
        bound = 1.0 / (input_dim ** 0.5)   # PyTorch Linear default init bound
        for p in self.n_prototypes:
            key, kw, kb = jax.random.split(key, 3)
            w = jax.random.uniform(kw, (p, input_dim), jnp.float32,
                                   minval=-bound, maxval=bound)
            b = jax.random.uniform(kb, (p,), jnp.float32,
                                   minval=-bound, maxval=bound)
            self.heads.append((w, b))
        self._repack()

    def _repack(self):
        """Transpose + cast ONCE (per construction / normalize) so every
        forward is exactly one pallas_call with no weight-side prep ops."""
        self._wts = [jax.device_put(w.T.astype(jnp.bfloat16))        # (D, P_h)
                     for (w, _) in self.heads]
        self._biases = [jax.device_put(b.astype(jnp.float32).reshape(1, -1))
                        for (_, b) in self.heads]                    # (1, P_h)

    def normalize(self):
        """Normalize prototypes (rows of each weight) to unit L2 norm."""
        self.heads = [(w / jnp.linalg.norm(w, axis=1, keepdims=True), b)
                      for (w, b) in self.heads]
        self._repack()

    def __call__(self, x, step=None):
        if self.n_steps_frozen_prototypes > 0 and step is None:
            raise ValueError(
                "`n_steps_frozen_prototypes` is greater than 0, please "
                "provide the `step` argument to the `forward()` method.")
        x = x.astype(jnp.float32)          # cast to bf16 happens inside the kernel
        outs = _swav_forward(x, self._wts, self._biases)
        return outs[0] if self._is_single_prototype else outs


if __name__ == "__main__":
    # Small shapes: batch=16, input_dim=32 features.
    B, D = 16, 32
    key = jax.random.PRNGKey(0)
    kx, k1, k2 = jax.random.split(key, 3)

    x = jax.random.normal(kx, (B, D), jnp.float32)
    # SwaV normalizes features to unit length before the prototype head.
    x = x / jnp.linalg.norm(x, axis=1, keepdims=True)

    def _ref(x, w, b):
        # Reference with the same bf16 input/weight cast, f32 accumulate.
        xw = (x.astype(jnp.bfloat16).astype(jnp.float32)
              @ w.T.astype(jnp.bfloat16).astype(jnp.float32))
        return xw + b

    # --- single-head case (int n_prototypes) ---
    proto = SwaVPrototypesJAX(input_dim=D, n_prototypes=256, key=k1)
    proto.normalize()
    logits = jax.block_until_ready(proto(x))
    w0, b0 = proto.heads[0]
    assert logits.shape == (B, 256)
    assert jnp.allclose(logits, _ref(x, w0, b0), atol=1e-4, rtol=1e-4)

    # --- multi-head case with ragged prototype counts (each head is its own
    #     pallas output with full-width last dim -> no padding or slicing) ---
    proto2 = SwaVPrototypesJAX(input_dim=D, n_prototypes=[300, 200], key=k2)
    outs = jax.block_until_ready(proto2(x))
    assert isinstance(outs, list) and len(outs) == 2
    assert outs[0].shape == (B, 300) and outs[1].shape == (B, 200)
    for (w, b), o in zip(proto2.heads, outs):
        assert jnp.allclose(o, _ref(x, w, b), atol=1e-4, rtol=1e-4)

    print("KERNEL_OK")
</pallas_src>

<mosaic_0001>
module attributes {stable_mosaic.version = 11 : i64} {
  func.func @kernel(%arg0: i32, %arg1: memref<16x32xf32, #tpu.memory_space<vmem>>, %arg2: memref<32x256xbf16, #tpu.memory_space<vmem>>, %arg3: memref<1x256xf32, #tpu.memory_space<vmem>>, %arg4: memref<16x256xf32, #tpu.memory_space<vmem>>) attributes {dimension_semantics = [#tpu.dimension_semantics<parallel>], iteration_bounds = array<i64: 1>, scalar_prefetch = 0 : i64, scratch_operands = 0 : i64, tpu.core_type = #tpu.core_type<tc>, window_params = [{transform_indices = @transform_0, window_bounds = array<i64: 16, 32>}, {pipeline_mode = #tpu.pipeline_mode<synchronous>, transform_indices = @transform_1, window_bounds = array<i64: 32, 256>}, {pipeline_mode = #tpu.pipeline_mode<synchronous>, transform_indices = @transform_2, window_bounds = array<i64: 1, 256>}, {transform_indices = @transform_3, window_bounds = array<i64: 16, 256>}]} {
    %c0 = arith.constant 0 : index
    %c0_0 = arith.constant 0 : index
    %0 = vector.load %arg1[%c0, %c0_0] : memref<16x32xf32, #tpu.memory_space<vmem>>, vector<16x32xf32>
    %1 = arith.truncf %0 : vector<16x32xf32> to vector<16x32xbf16>
    %c0_1 = arith.constant 0 : index
    %c0_2 = arith.constant 0 : index
    %2 = vector.load %arg2[%c0_1, %c0_2] : memref<32x256xbf16, #tpu.memory_space<vmem>>, vector<32x256xbf16>
    %cst = arith.constant dense<0.000000e+00> : vector<16x256xf32>
    %3 = tpu.matmul %1, %2, %cst {dimension_numbers = #tpu.dot_dimension_numbers<[1], [0], [0], [1], [0, 0, 1, 1], [], []>} : vector<16x32xbf16>, vector<32x256xbf16>, vector<16x256xf32> -> vector<16x256xf32>
    %c0_3 = arith.constant 0 : index
    %c0_4 = arith.constant 0 : index
    %4 = vector.load %arg3[%c0_3, %c0_4] : memref<1x256xf32, #tpu.memory_space<vmem>>, vector<1x256xf32>
    %5 = vector.broadcast %4 : vector<1x256xf32> to vector<16x256xf32>
    %6 = arith.addf %3, %5 : vector<16x256xf32>
    %c0_5 = arith.constant 0 : index
    %c0_6 = arith.constant 0 : index
    %7 = vector.load %arg4[%c0_5, %c0_6] : memref<16x256xf32, #tpu.memory_space<vmem>>, vector<16x256xf32>
    tpu.vector_store %arg4[%c0_5, %c0_6], %6 {strides = array<i32>} : memref<16x256xf32, #tpu.memory_space<vmem>>, vector<16x256xf32>,
    return
  }
  func.func @transform_0(%arg0: i32) -> (i32, i32) {
    %c0_i32 = arith.constant 0 : i32
    %c0_i32_0 = arith.constant 0 : i32
    return %arg0, %c0_i32 : i32, i32
  }
  func.func @transform_1(%arg0: i32) -> (i32, i32) {
    %c0_i32 = arith.constant 0 : i32
    %c0_i32_0 = arith.constant 0 : i32
    %c0_i32_1 = arith.constant 0 : i32
    return %c0_i32, %c0_i32_0 : i32, i32
  }
  func.func @transform_2(%arg0: i32) -> (i32, i32) {
    %c0_i32 = arith.constant 0 : i32
    %c0_i32_0 = arith.constant 0 : i32
    %c0_i32_1 = arith.constant 0 : i32
    return %c0_i32, %c0_i32_0 : i32, i32
  }
  func.func @transform_3(%arg0: i32) -> (i32, i32) {
    %c0_i32 = arith.constant 0 : i32
    %c0_i32_0 = arith.constant 0 : i32
    return %arg0, %c0_i32 : i32, i32
  }
}

</mosaic_0001>

<llo_original>
// kernel: tpu_custom_call.1
$region0: #{tpu_custom_call.1}
  #allocation0 [shape = 'u32[]', space=smem, size = 0x4, offset = 0x4, fixed_abs, tag = 'smem constant byte address 0x4 - core index']
  #allocation1 [shape = 'u32[144,128]{1,0:T(1,128)}', space=vmem, size = 0x12000, scoped, tag = 'internal scratch']
  %s0 = inlined_call_operand.hbm [shape: f32[16,32], index: 0, kind: input, shape index: {}]
  %s1 = inlined_call_operand.hbm [shape: bf16[32,256], index: 1, kind: input, shape index: {}]
  %s2 = inlined_call_operand.vmem [shape: f32[1,256], index: 2, kind: input, shape index: {}]
  %s3 = inlined_call_operand.hbm [shape: f32[16,256], index: 3, kind: output, shape index: {}]
  %s4 = sld [smem:[#allocation0]]
  $region30: #{tpu_custom_call.1} parent=0
    _
  %s6 = ssub.s32 1, %s4
  %s7 = scalar_select 0, %s6, %s4
  $region1: #{tpu_custom_call.1} parent=0
    #allocation2 [shape = 'u8[8192]{0}', space=vmem, size = 0x2000, scoped, tag = 'input window, operand 0, single buffered']
    #allocation3 [shape = 's32[1]{0}', space=sflag, size = 0x4, scoped, tag = 'scoped memory for tpu_custom_call.1']
    #allocation4 [shape = 's32[1]{0}', space=sflag, size = 0x4, scoped, tag = 'scoped memory for tpu_custom_call.1']
    #allocation5 [shape = 'u8[16384]{0}', space=vmem, size = 0x4000, scoped, tag = 'input window, operand 1, single buffered']
    #allocation6 [shape = 's32[1]{0}', space=sflag, size = 0x4, scoped, tag = 'scoped memory for tpu_custom_call.1']
    #allocation7 [shape = 'u8[16384]{0}', space=vmem, size = 0x4000, scoped, tag = 'output window, operand 0, single buffered']
    %8 = vsyncpa [#allocation3], 0
    %9 = vsyncpa [#allocation6], 0
    %10 = vsyncpa [#allocation4], 0
    // Predicated region
    $region2: #{tpu_custom_call.1} parent=1 // pred_check
      _
    $region3: #{tpu_custom_call.1} parent=1 // pred_check_branch
      %12 = sbr.rel (0) target = $region5
    $region4: #{tpu_custom_call.1} parent=1 // pred_region
      %s14 = ssub.s32 256, 256
      %15 = vsyncadd [#allocation3], %s14
      %s16 = sshll.u32 [#allocation2], 4
      %s17 = int_to_ptr.vmem [resolvable:$true] %s16
      %22 = dma.hbm_to_vmem [thread:$0]  %s0, 256, %s17, [#allocation3], 128, 128, 8
    $region5: #{tpu_custom_call.1} parent=1 // pred_fallthru
      _
    // Predicated region
    $region6: #{tpu_custom_call.1} parent=1 // pred_check
      _
    $region7: #{tpu_custom_call.1} parent=1 // pred_check_branch
      %24 = sbr.rel (0) target = $region9
    $region8: #{tpu_custom_call.1} parent=1 // pred_region
      %s26 = ssub.s32 512, 512
      %27 = vsyncadd [#allocation6], %s26
      %s28 = sshll.u32 [#allocation5], 4
      %s29 = int_to_ptr.vmem [resolvable:$true] %s28
      %34 = dma.hbm_to_vmem [thread:$0]  %s1, 512, %s29, [#allocation6], 128, 128, 8
    $region9: #{tpu_custom_call.1} parent=1 // pred_fallthru
      _
    // Predicated region
    $region10: #{tpu_custom_call.1} parent=1 // pred_check
      _
    $region11: #{tpu_custom_call.1} parent=1 // pred_check_branch
      %36 = sbr.rel (0) target = $region13
    $region12: #{tpu_custom_call.1} parent=1 // pred_region
      _
    $region13: #{tpu_custom_call.1} parent=1 // pred_fallthru
      _
    // Predicated region
    $region14: #{tpu_custom_call.1} parent=1 // pred_check
      _
    $region15: #{tpu_custom_call.1} parent=1 // pred_check_branch
      %38 = sbr.rel (0) target = $region17
    $region16: #{tpu_custom_call.1} parent=1 // pred_region
      %39 = dma.done [#allocation3], 256
    $region17: #{tpu_custom_call.1} parent=1 // pred_fallthru
      _
    // Predicated region
    $region18: #{tpu_custom_call.1} parent=1 // pred_check
      _
    $region19: #{tpu_custom_call.1} parent=1 // pred_check_branch
      %41 = sbr.rel (0) target = $region21
    $region20: #{tpu_custom_call.1} parent=1 // pred_region
      %42 = dma.done [#allocation6], 512
    $region21: #{tpu_custom_call.1} parent=1 // pred_fallthru
      _
    %v44 = vld [vmem:[#allocation2] sm:$0xff]
    %v45 = vld [vmem:[#allocation2 + $0x8] sm:$0xff]
    %v46 = vpack.c.bf16 %v45, %v44
    %v47 = vld [vmem:[#allocation5] sm:$0xff]
    %v48 = vld [vmem:[#allocation5 + $0x8] sm:$0xff]
    %v49 = vld [vmem:[#allocation5 + $0x10] sm:$0xff]
    %v50 = vld [vmem:[#allocation5 + $0x18] sm:$0xff]
    %v51 = vld [vmem:[%s2] sm:$0x3]
    %v53 = vlaneseq
    %v54 = vshrl.u32 %v53, 7
    %v55 = vsub.s32 0, %v54
    %v56 = vrot.slane %v51, %v55
    %v57 = vlaneseq
    %v58 = vshrl.u32 %v57, 7
    %v59 = vsub.s32 1, %v58
    %v60 = vrot.slane %v51, %v59
    %v67 = vunpack.c.l.b16 %v47
    %v68 = vunpack.c.h.b16 %v47
    %v69 = vunpack.c.l.b16 %v48
    %v70 = vunpack.c.h.b16 %v48
    %v71 = vunpack.c.l.b16 %v49
    %v72 = vunpack.c.h.b16 %v49
    %v73 = vunpack.c.l.b16 %v50
    %v74 = vunpack.c.h.b16 %v50
    %v75 = vpack.c.b16 %v69, %v67
    %v76 = vpack.c.b16 %v70, %v68
    %v77 = vpack.c.b16 %v73, %v71
    %v78 = vpack.c.b16 %v74, %v72
    %vm83 = vcmask 261120
    %v85 = vsel %vm83, %v46, 0
    %87 = vmatprep.subr.bf16.mxu0 %v76
    %88 = vmatpush1.bf16.msra.mxu0 %v75
    %89 = vmatprep.subr.bf16.mxu0 %v78
    %90 = vmatpush1.bf16.msra.mxu0 %v77
    %91 = vmatprep.subr.bf16.mxu0 0
    %92 = vmatpush1.bf16.msra.mxu0 0
    %93 = vmatprep.subr.bf16.mxu0 0
    %94 = vmatpush1.bf16.msra.mxu0 0
    %95 = vmatprep.subr.bf16.mxu0 0
    %96 = vmatpush1.bf16.msra.mxu0 0
    %97 = vmatprep.subr.bf16.mxu0 0
    %98 = vmatpush1.bf16.msra.mxu0 0
    %99 = vmatprep.subr.bf16.mxu0 0
    %100 = vmatpush1.bf16.msra.mxu0 0
    %101 = vmatprep.subr.bf16.mxu0 0
    %102 = vmatpush1.bf16.msra.mxu0 0
    %103 = vmatprep.subr.bf16.mxu0 0
    %104 = vmatpush1.bf16.msra.mxu0 0
    %105 = vmatprep.subr.bf16.mxu0 0
    %106 = vmatpush1.bf16.msra.mxu0 0
    %107 = vmatprep.subr.bf16.mxu0 0
    %108 = vmatpush1.bf16.msra.mxu0 0
    %109 = vmatprep.subr.bf16.mxu0 0
    %110 = vmatpush1.bf16.msra.mxu0 0
    %111 = vmatprep.subr.bf16.mxu0 0
    %112 = vmatpush1.bf16.msra.mxu0 0
    %113 = vmatprep.subr.bf16.mxu0 0
    %114 = vmatpush1.bf16.msra.mxu0 0
    %115 = vmatprep.subr.bf16.mxu0 0
    %116 = vmatpush1.bf16.msra.mxu0 0
    %117 = vmatprep.subr.bf16.mxu0 0
    %118 = vmatpush1.bf16.msra.mxu0 0
    %119 = vmatprep.mubr.bf16.mxu0 0
    %120 = vmatmul.mubr.bf16.gmra.mrb[0].mxu0 %v85
    %v121 = vpop.f32.mrb[0].mxu0
    %v122 = vadd.f32 %v56, %v121
    %v123 = vpop.f32.mrb[0].mxu0
    %v124 = vadd.f32 %v60, %v123
    %v125 = vpop.f32.mrb[0].mxu0
    %v126 = vadd.f32 %v56, %v125
    %v127 = vpop.f32.mrb[0].mxu0
    %v128 = vadd.f32 %v60, %v127
    %129 = vdwg.mxu0
    %130 = vst [vmem:[#allocation7] sm:$0xff] %v122
    %131 = vst [vmem:[#allocation7 + $0x8] sm:$0xff] %v124
    %132 = vst [vmem:[#allocation7 + $0x10] sm:$0xff] %v126
    %133 = vst [vmem:[#allocation7 + $0x18] sm:$0xff] %v128
    // Predicated region
    $region22: #{tpu_custom_call.1} parent=1 // pred_check
      _
    $region23: #{tpu_custom_call.1} parent=1 // pred_check_branch
      %135 = sbr.rel (0) target = $region25
    $region24: #{tpu_custom_call.1} parent=1 // pred_region
      %s137 = ssub.s32 512, 512
      %138 = vsyncadd [#allocation4], %s137
      %s139 = sshll.u32 [#allocation7], 4
      %s140 = int_to_ptr.vmem [resolvable:$true] %s139
      %145 = dma.vmem_to_hbm [thread:$0]  %s140, 512, %s3, [#allocation4], 256, 256, 16
    $region25: #{tpu_custom_call.1} parent=1 // pred_fallthru
      _
    // Predicated region
    $region26: #{tpu_custom_call.1} parent=1 // pred_check
      _
    $region27: #{tpu_custom_call.1} parent=1 // pred_check_branch
      %147 = sbr.rel (0) target = $region29
    $region28: #{tpu_custom_call.1} parent=1 // pred_region
      %148 = dma.done [#allocation4], 512
    $region29: #{tpu_custom_call.1} parent=1 // pred_fallthru
      _
    %149 = vsyncpa [#allocation3], 1
    %150 = vsyncpa [#allocation6], 1
    %151 = vsyncpa [#allocation4], 1

</llo_original>
